<compile_context>
chip_gen: v5e
topology: v5e:2x2
jax: 0.10.0
libtpu: 0.0.40
codegen_flags: <defaults>
</compile_context>

<pallas_src>
import functools

import jax
import jax.numpy as jnp
from jax.experimental import pallas as pl
from jax.experimental.pallas import tpu as pltpu


def cnn_encoder_kernel(tok_ref, emb_ref, w_ref, b_ref, o_ref):
    # tok_ref: (B*S, 1) int32   token ids (flattened)
    # emb_ref: (V, E)   f32     embedding table (VMEM resident — tiny here)
    # w_ref:   (3*E, O) f32     conv weights in im2col layout (tap-major rows)
    # b_ref:   (1, O)   f32     conv bias
    # o_ref:   (B, O)   f32     pooled features (== PyTorch features.view(batch, -1))
    BS = tok_ref.shape[0]
    V, E = emb_ref.shape
    B, O = o_ref.shape
    S = BS // B

    # --- fused embedding lookup: one-hot (B*S, V) @ table (V, E) on the MXU -------------
    # TODO(synk): for a production-size vocab, replace this one-hot matmul gather with a
    # manual DMA row-gather from an HBM-resident table (memory_space=pl.ANY + make_async_copy).
    tok = tok_ref[...]                                              # (BS, 1)
    iota_v = jax.lax.broadcasted_iota(jnp.int32, (BS, V), 1)
    onehot = (iota_v == tok).astype(jnp.float32)                    # (BS, V)
    x = jnp.dot(onehot, emb_ref[...],
                preferred_element_type=jnp.float32)                 # (BS, E)
    x = x.reshape(B, S, E)

    # --- conv padding=1: zero halo built directly in VMEM (no HBM round trip) -----------
    zero = jnp.zeros((B, 1, E), jnp.float32)
    xp = jnp.concatenate([zero, x, zero], axis=1)                   # (B, S+2, E)

    # --- Conv1d(kernel=3) as a single im2col matmul: (B*S, 3E) @ (3E, O) ----------------
    win = jnp.concatenate(
        [xp[:, 0:S, :], xp[:, 1:S + 1, :], xp[:, 2:S + 2, :]],
        axis=-1,
    ).reshape(BS, 3 * E)                                            # (BS, 3E)
    conv = jnp.dot(win, w_ref[...],
                   preferred_element_type=jnp.float32)              # (BS, O)

    # --- MaxPool1d over the full sequence, then bias + ReLU ------------------------------
    # (bias is constant over s and ReLU is monotonic, so relu(max(conv)+b) == max(relu(conv+b)))
    pooled = jnp.max(conv.reshape(B, S, O), axis=1)                 # (B, O)
    o_ref[...] = jnp.maximum(pooled + b_ref[...], 0.0)


def prepare_params(emb_table, conv_w, conv_b):
    """One-time layout prep, hoisted out of the per-step forward.

    conv_w is PyTorch layout (O, E, 3); conv_b is (O,).
    Returns (emb f32 (V,E), weights im2col (3E,O), bias (1,O)).
    """
    O, E, K = conv_w.shape
    assert K == 3
    w_im2col = jnp.transpose(conv_w, (2, 1, 0)).reshape(K * E, O).astype(jnp.float32)
    b2 = conv_b.reshape(1, O).astype(jnp.float32)
    return emb_table.astype(jnp.float32), w_im2col, b2


@functools.partial(jax.jit, static_argnums=(4,))
def cnn_encoder_forward(x_tokens, emb_f32, w_im2col, b2, num_support):
    B, S = x_tokens.shape
    O = w_im2col.shape[1]
    tok = x_tokens.reshape(B * S, 1).astype(jnp.int32)

    out = pl.pallas_call(
        cnn_encoder_kernel,
        out_shape=jax.ShapeDtypeStruct((B, O), jnp.float32),
        in_specs=[
            pl.BlockSpec(memory_space=pltpu.MemorySpace.VMEM),  # tokens
            pl.BlockSpec(memory_space=pltpu.MemorySpace.VMEM),  # embedding table
            pl.BlockSpec(memory_space=pltpu.MemorySpace.VMEM),  # conv weights (im2col)
            pl.BlockSpec(memory_space=pltpu.MemorySpace.VMEM),  # conv bias
        ],
        out_specs=pl.BlockSpec(memory_space=pltpu.MemorySpace.VMEM),
    )(tok, emb_f32, w_im2col, b2)

    support = out[:num_support]
    query = out[num_support:]
    return support, query


def _reference(x_tokens, emb_table, conv_w, conv_b, num_support):
    # Independent pure-JAX reference of the PyTorch forward.
    emb = jnp.take(emb_table, x_tokens, axis=0).astype(jnp.float32)   # (B, S, E)
    x_ncl = jnp.transpose(emb, (0, 2, 1))                             # (B, E, S)
    fm = jax.lax.conv_general_dilated(
        x_ncl, conv_w.astype(jnp.float32),
        window_strides=(1,), padding=((1, 1),),
        dimension_numbers=("NCH", "OIH", "NCH"))
    fm = fm + conv_b[None, :, None]
    fm = jnp.maximum(fm, 0.0)
    out = jnp.max(fm, axis=2)                                         # (B, O)
    return out[:num_support], out[num_support:]


if __name__ == "__main__":
    # Small, deterministic configuration consistent with the module.
    vocab = 50
    embed_dim = 32        # opt.embed_dim
    hidden_dim = 16       # opt.hidden_dim -> conv out channels = 32
    seq_len = 8           # opt.max_seq_len
    ways, shots = 2, 2
    num_support = ways * shots   # 4
    batch = 8                    # 4 support + 4 query

    key = jax.random.PRNGKey(0)
    k1, k2, k3, k4 = jax.random.split(key, 4)

    emb_table = jax.random.normal(k1, (vocab, embed_dim), jnp.float32) * 0.1
    conv_w = jax.random.normal(k2, (2 * hidden_dim, embed_dim, 3), jnp.float32) * 0.1
    conv_b = jax.random.normal(k3, (2 * hidden_dim,), jnp.float32) * 0.1
    x = jax.random.randint(k4, (batch, seq_len), 0, vocab)

    # One-time parameter layout prep (hoisted out of the hot path).
    emb_f32, w_im2col, b2 = prepare_params(emb_table, conv_w, conv_b)

    support, query = cnn_encoder_forward(x, emb_f32, w_im2col, b2, num_support)
    jax.block_until_ready((support, query))

    ref_s, ref_q = _reference(x, emb_table, conv_w, conv_b, num_support)
    assert support.shape == (num_support, 2 * hidden_dim)
    assert query.shape == (batch - num_support, 2 * hidden_dim)
    assert jnp.allclose(support, ref_s, atol=1e-5)
    assert jnp.allclose(query, ref_q, atol=1e-5)

    print("KERNEL_OK")
</pallas_src>

<mosaic_0001>
module attributes {stable_mosaic.version = 11 : i64} {
  func.func @cnn_encoder_kernel(%arg0: memref<64x1xi32, #tpu.memory_space<vmem>>, %arg1: memref<50x32xf32, #tpu.memory_space<vmem>>, %arg2: memref<96x32xf32, #tpu.memory_space<vmem>>, %arg3: memref<1x32xf32, #tpu.memory_space<vmem>>, %arg4: memref<8x32xf32, #tpu.memory_space<vmem>>) attributes {dimension_semantics = [], scalar_prefetch = 0 : i64, scratch_operands = 0 : i64, tpu.core_type = #tpu.core_type<tc>} {
    %c0 = arith.constant 0 : index
    %c0_0 = arith.constant 0 : index
    %0 = vector.load %arg0[%c0, %c0_0] : memref<64x1xi32, #tpu.memory_space<vmem>>, vector<64x1xi32>
    %1 = tpu.iota {dimensions = array<i32: 1>} : vector<64x50xi32>
    %2 = vector.broadcast %0 : vector<64x1xi32> to vector<64x50xi32>
    %3 = arith.cmpi eq, %1, %2 : vector<64x50xi32>
    %4 = arith.extui %3 : vector<64x50xi1> to vector<64x50xi32>
    %5 = arith.sitofp %4 : vector<64x50xi32> to vector<64x50xf32>
    %c0_1 = arith.constant 0 : index
    %c0_2 = arith.constant 0 : index
    %6 = vector.load %arg1[%c0_1, %c0_2] : memref<50x32xf32, #tpu.memory_space<vmem>>, vector<50x32xf32>
    %cst = arith.constant dense<0.000000e+00> : vector<64x32xf32>
    %7 = tpu.matmul %5, %6, %cst {dimension_numbers = #tpu.dot_dimension_numbers<[1], [0], [0], [1], [0, 0, 1, 1], [], []>} : vector<64x50xf32>, vector<50x32xf32>, vector<64x32xf32> -> vector<64x32xf32>
    %8 = vector.shape_cast %7 : vector<64x32xf32> to vector<8x8x32xf32>
    %cst_3 = arith.constant 0.000000e+00 : f32
    %9 = vector.broadcast %cst_3 : f32 to vector<8x1x32xf32>
    %10 = tpu.concatenate %9, %8, %9 in 1 : vector<8x1x32xf32>, vector<8x8x32xf32>, vector<8x1x32xf32> -> vector<8x10x32xf32>
    %11 = vector.extract_strided_slice %10 {offsets = [0, 0, 0], sizes = [8, 8, 32], strides = [1, 1, 1]} : vector<8x10x32xf32> to vector<8x8x32xf32>
    %12 = vector.extract_strided_slice %10 {offsets = [0, 1, 0], sizes = [8, 8, 32], strides = [1, 1, 1]} : vector<8x10x32xf32> to vector<8x8x32xf32>
    %13 = vector.extract_strided_slice %10 {offsets = [0, 2, 0], sizes = [8, 8, 32], strides = [1, 1, 1]} : vector<8x10x32xf32> to vector<8x8x32xf32>
    %14 = tpu.concatenate %11, %12, %13 in 2 : vector<8x8x32xf32>, vector<8x8x32xf32>, vector<8x8x32xf32> -> vector<8x8x96xf32>
    %15 = vector.shape_cast %14 : vector<8x8x96xf32> to vector<64x96xf32>
    %c0_4 = arith.constant 0 : index
    %c0_5 = arith.constant 0 : index
    %16 = vector.load %arg2[%c0_4, %c0_5] : memref<96x32xf32, #tpu.memory_space<vmem>>, vector<96x32xf32>
    %cst_6 = arith.constant dense<0.000000e+00> : vector<64x32xf32>
    %17 = tpu.matmul %15, %16, %cst_6 {dimension_numbers = #tpu.dot_dimension_numbers<[1], [0], [0], [1], [0, 0, 1, 1], [], []>} : vector<64x96xf32>, vector<96x32xf32>, vector<64x32xf32> -> vector<64x32xf32>
    %18 = vector.shape_cast %17 : vector<64x32xf32> to vector<8x8x32xf32>
    %cst_7 = arith.constant dense<0xFF800000> : vector<8x32xf32>
    %19 = vector.multi_reduction <maximumf>, %18, %cst_7 [1] : vector<8x8x32xf32> to vector<8x32xf32>
    %c0_8 = arith.constant 0 : index
    %c0_9 = arith.constant 0 : index
    %20 = vector.load %arg3[%c0_8, %c0_9] : memref<1x32xf32, #tpu.memory_space<vmem>>, vector<1x32xf32>
    %21 = vector.broadcast %20 : vector<1x32xf32> to vector<8x32xf32>
    %22 = arith.addf %19, %21 : vector<8x32xf32>
    %cst_10 = arith.constant 0.000000e+00 : f32
    %23 = vector.broadcast %cst_10 : f32 to vector<8x32xf32>
    %24 = arith.maximumf %22, %23 : vector<8x32xf32>
    %c0_11 = arith.constant 0 : index
    %c0_12 = arith.constant 0 : index
    %25 = vector.load %arg4[%c0_11, %c0_12] : memref<8x32xf32, #tpu.memory_space<vmem>>, vector<8x32xf32>
    tpu.vector_store %arg4[%c0_11, %c0_12], %24 {strides = array<i32>} : memref<8x32xf32, #tpu.memory_space<vmem>>, vector<8x32xf32>,
    return
  }
}

</mosaic_0001>

<llo_original>
// kernel: cnn_encoder_forward.1
$region0: #{cnn_encoder_forward.1}
  #allocation0 [shape = 'u32[]', space=smem, size = 0x4, offset = 0x4, fixed_abs, tag = 'smem constant byte address 0x4 - core index']
  #allocation1 [shape = 'u32[72,128]{1,0:T(1,128)}', space=vmem, size = 0x9000, scoped, tag = 'internal scratch']
  %s0 = inlined_call_operand.vmem [shape: s32[64,1], index: 0, kind: input, shape index: {}]
  %s1 = inlined_call_operand.vmem [shape: f32[50,32], index: 1, kind: input, shape index: {}]
  %s2 = inlined_call_operand.vmem [shape: f32[96,32], index: 2, kind: input, shape index: {}]
  %s3 = inlined_call_operand.vmem [shape: f32[1,32], index: 3, kind: input, shape index: {}]
  %s4 = inlined_call_operand.vmem [shape: f32[8,32], index: 4, kind: output, shape index: {}]
  %s5 = sld [smem:[#allocation0]]
  $region26: #{cnn_encoder_forward.1} parent=0
    _
  %s7 = ssub.s32 1, %s5
  %s8 = scalar_select 0, %s7, %s5
  // Predicated region
  $region2: #{cnn_encoder_forward.1} parent=0 // pred_check
    _
  $region3: #{cnn_encoder_forward.1} parent=0 // pred_check_branch
    %10 = sbr.rel (0) target = $region5
  $region4: #{cnn_encoder_forward.1} parent=0 // pred_region
    _
  $region5: #{cnn_encoder_forward.1} parent=0 // pred_fallthru
    _
  // Predicated region
  $region6: #{cnn_encoder_forward.1} parent=0 // pred_check
    _
  $region7: #{cnn_encoder_forward.1} parent=0 // pred_check_branch
    %12 = sbr.rel (0) target = $region9
  $region8: #{cnn_encoder_forward.1} parent=0 // pred_region
    _
  $region9: #{cnn_encoder_forward.1} parent=0 // pred_fallthru
    _
  // Predicated region
  $region10: #{cnn_encoder_forward.1} parent=0 // pred_check
    _
  $region11: #{cnn_encoder_forward.1} parent=0 // pred_check_branch
    %14 = sbr.rel (0) target = $region13
  $region12: #{cnn_encoder_forward.1} parent=0 // pred_region
    _
  $region13: #{cnn_encoder_forward.1} parent=0 // pred_fallthru
    _
  // Predicated region
  $region14: #{cnn_encoder_forward.1} parent=0 // pred_check
    _
  $region15: #{cnn_encoder_forward.1} parent=0 // pred_check_branch
    %16 = sbr.rel (0) target = $region17
  $region16: #{cnn_encoder_forward.1} parent=0 // pred_region
    _
  $region17: #{cnn_encoder_forward.1} parent=0 // pred_fallthru
    _
  %v17 = vld [vmem:[%s0] sm:$0xff]
  %v18 = vld [vmem:[%s0 + $0x8] sm:$0xff]
  %v19 = vld [vmem:[%s0 + $0x10] sm:$0xff]
  %v20 = vld [vmem:[%s0 + $0x18] sm:$0xff]
  %v21 = vld [vmem:[%s0 + $0x20] sm:$0xff]
  %v22 = vld [vmem:[%s0 + $0x28] sm:$0xff]
  %v23 = vld [vmem:[%s0 + $0x30] sm:$0xff]
  %v24 = vld [vmem:[%s0 + $0x38] sm:$0xff]
  %v25 = vlaneseq
  %v26 = vand.u32 %v25, 127
  %27 = vset.pattern.permute.xlu0 0
  %28 = vperm.xlu0 %27, %v17
  %v29 = vpop.permute.xlu0 %28
  %30 = vset.pattern.permute.xlu0 0
  %31 = vperm.xlu0 %30, %v18
  %v32 = vpop.permute.xlu0 %31
  %33 = vset.pattern.permute.xlu0 0
  %34 = vperm.xlu0 %33, %v19
  %v35 = vpop.permute.xlu0 %34
  %36 = vset.pattern.permute.xlu0 0
  %37 = vperm.xlu0 %36, %v20
  %v38 = vpop.permute.xlu0 %37
  %39 = vset.pattern.permute.xlu0 0
  %40 = vperm.xlu0 %39, %v21
  %v41 = vpop.permute.xlu0 %40
  %42 = vset.pattern.permute.xlu0 0
  %43 = vperm.xlu0 %42, %v22
  %v44 = vpop.permute.xlu0 %43
  %45 = vset.pattern.permute.xlu0 0
  %46 = vperm.xlu0 %45, %v23
  %v47 = vpop.permute.xlu0 %46
  %48 = vset.pattern.permute.xlu0 0
  %49 = vperm.xlu0 %48, %v24
  %v50 = vpop.permute.xlu0 %49
  %vm51 = vcmp.eq.s32.totalorder %v26, %v29
  %vm52 = vcmp.eq.s32.totalorder %v26, %v32
  %vm53 = vcmp.eq.s32.totalorder %v26, %v35
  %vm54 = vcmp.eq.s32.totalorder %v26, %v38
  %vm55 = vcmp.eq.s32.totalorder %v26, %v41
  %vm56 = vcmp.eq.s32.totalorder %v26, %v44
  %vm57 = vcmp.eq.s32.totalorder %v26, %v47
  %vm58 = vcmp.eq.s32.totalorder %v26, %v50
  %v59 = vsel %vm51, 1, 0
  %v60 = vsel %vm52, 1, 0
  %v61 = vsel %vm53, 1, 0
  %v62 = vsel %vm54, 1, 0
  %v63 = vsel %vm55, 1, 0
  %v64 = vsel %vm56, 1, 0
  %v65 = vsel %vm57, 1, 0
  %v66 = vsel %vm58, 1, 0
  %v67 = vcvt.s32.f32 %v59
  %v68 = vcvt.s32.f32 %v60
  %v69 = vcvt.s32.f32 %v61
  %v70 = vcvt.s32.f32 %v62
  %v71 = vcvt.s32.f32 %v63
  %v72 = vcvt.s32.f32 %v64
  %v73 = vcvt.s32.f32 %v65
  %v74 = vcvt.s32.f32 %v66
  %v75 = vld [vmem:[%s1] sm:$0xff]
  %v76 = vld [vmem:[%s1 + $0x8] sm:$0xff]
  %v77 = vld [vmem:[%s1 + $0x10] sm:$0xff]
  %v78 = vld [vmem:[%s1 + $0x18] sm:$0xff]
  %v79 = vld [vmem:[%s1 + $0x20] sm:$0xff]
  %v80 = vld [vmem:[%s1 + $0x28] sm:$0xff]
  %v81 = vld [vmem:[%s1 + $0x30] sm:$0x3]
  %vm82 = vcmask 408576
  %v84 = vsel %vm82, %v67, 0
  %v87 = vsel %vm82, %v68, 0
  %v90 = vsel %vm82, %v69, 0
  %v93 = vsel %vm82, %v70, 0
  %v96 = vsel %vm82, %v71, 0
  %v99 = vsel %vm82, %v72, 0
  %v102 = vsel %vm82, %v73, 0
  %v105 = vsel %vm82, %v74, 0
  %vm107 = vcmask 1041408
  %v109 = vsel %vm107, %v81, 0
  %111 = vmatpush.msra.mxu0 0.0
  %112 = vmatpush.msra.mxu0 0.0
  %113 = vmatpush.msra.mxu0 0.0
  %114 = vmatpush.msra.mxu0 0.0
  %115 = vmatpush.msra.mxu0 0.0
  %116 = vmatpush.msra.mxu0 0.0
  %117 = vmatpush.msra.mxu0 0.0
  %118 = vmatpush.msra.mxu0 0.0
  %119 = vmatpush.msra.mxu0 0.0
  %120 = vmatpush.msra.mxu0 %v109
  %121 = vmatpush.msra.mxu0 %v80
  %122 = vmatpush.msra.mxu0 %v79
  %123 = vmatpush.msra.mxu0 %v78
  %124 = vmatpush.msra.mxu0 %v77
  %125 = vmatpush.msra.mxu0 %v76
  %126 = vmatpush.msra.mxu0 %v75
  %127 = vmatmul.f32.gmra.mxu0 %v84
  %v128 = vpop.f32.mrf.mxu0
  %v129 = vadd.f32 0.0, %v128
  %130 = vmatmul.f32.gmra.mxu0 %v87
  %v131 = vpop.f32.mrf.mxu0
  %v132 = vadd.f32 0.0, %v131
  %133 = vmatmul.f32.gmra.mxu0 %v90
  %v134 = vpop.f32.mrf.mxu0
  %v135 = vadd.f32 0.0, %v134
  %136 = vmatmul.f32.gmra.mxu0 %v93
  %v137 = vpop.f32.mrf.mxu0
  %v138 = vadd.f32 0.0, %v137
  %139 = vmatmul.f32.gmra.mxu0 %v96
  %v140 = vpop.f32.mrf.mxu0
  %v141 = vadd.f32 0.0, %v140
  %142 = vmatmul.f32.gmra.mxu0 %v99
  %v143 = vpop.f32.mrf.mxu0
  %v144 = vadd.f32 0.0, %v143
  %145 = vmatmul.f32.gmra.mxu0 %v102
  %v146 = vpop.f32.mrf.mxu0
  %v147 = vadd.f32 0.0, %v146
  %148 = vmatmul.f32.gmra.mxu0 %v105
  %v149 = vpop.f32.mrf.mxu0
  %v150 = vadd.f32 0.0, %v149
  %151 = vdwg.mxu0
  %v160 = vrot.slane %v129, 7
  %v161 = vrot.slane %v132, 7
  %v162 = vrot.slane %v135, 7
  %v163 = vrot.slane %v138, 7
  %v164 = vrot.slane %v141, 7
  %v165 = vrot.slane %v144, 7
  %v166 = vrot.slane %v147, 7
  %v167 = vrot.slane %v150, 7
  %vm176 = vcmask 1040384
  %v177 = vsel %vm176, 0.0, %v160
  %v178 = vsel %vm176, 0.0, %v161
  %v179 = vsel %vm176, 0.0, %v162
  %v180 = vsel %vm176, 0.0, %v163
  %v181 = vsel %vm176, 0.0, %v164
  %v182 = vsel %vm176, 0.0, %v165
  %v183 = vsel %vm176, 0.0, %v166
  %v184 = vsel %vm176, 0.0, %v167
  %v185 = vsel %vm176, %v160, 0.0
  %v186 = vsel %vm176, %v161, 0.0
  %v187 = vsel %vm176, %v162, 0.0
  %v188 = vsel %vm176, %v163, 0.0
  %v189 = vsel %vm176, %v164, 0.0
  %v190 = vsel %vm176, %v165, 0.0
  %v191 = vsel %vm176, %v166, 0.0
  %v192 = vsel %vm176, %v167, 0.0
  %vm209 = vcmask 1046528
  %v210 = vrot.slane %v177, 1
  %v211 = vrot.slane %v185, 1
  %v212 = vsel %vm209, %v210, %v211
  %v213 = vrot.slane %v178, 1
  %v214 = vrot.slane %v186, 1
  %v215 = vsel %vm209, %v213, %v214
  %v216 = vrot.slane %v179, 1
  %v217 = vrot.slane %v187, 1
  %v218 = vsel %vm209, %v216, %v217
  %v219 = vrot.slane %v180, 1
  %v220 = vrot.slane %v188, 1
  %v221 = vsel %vm209, %v219, %v220
  %v222 = vrot.slane %v181, 1
  %v223 = vrot.slane %v189, 1
  %v224 = vsel %vm209, %v222, %v223
  %v225 = vrot.slane %v182, 1
  %v226 = vrot.slane %v190, 1
  %v227 = vsel %vm209, %v225, %v226
  %v228 = vrot.slane %v183, 1
  %v229 = vrot.slane %v191, 1
  %v230 = vsel %vm209, %v228, %v229
  %v231 = vrot.slane %v184, 1
  %v232 = vrot.slane %v192, 1
  %v233 = vsel %vm209, %v231, %v232
  %234 = vrot.lane.b32.xlu0 %v212, 32
  %v235 = vpop.permute.xlu0 %234
  %236 = vrot.lane.b32.xlu0 %v215, 32
  %v237 = vpop.permute.xlu0 %236
  %238 = vrot.lane.b32.xlu0 %v218, 32
  %v239 = vpop.permute.xlu0 %238
  %240 = vrot.lane.b32.xlu0 %v221, 32
  %v241 = vpop.permute.xlu0 %240
  %242 = vrot.lane.b32.xlu0 %v224, 32
  %v243 = vpop.permute.xlu0 %242
  %244 = vrot.lane.b32.xlu0 %v227, 32
  %v245 = vpop.permute.xlu0 %244
  %246 = vrot.lane.b32.xlu0 %v230, 32
  %v247 = vpop.permute.xlu0 %246
  %248 = vrot.lane.b32.xlu0 %v233, 32
  %v249 = vpop.permute.xlu0 %248
  %vm258 = vcmask 1045504
  %v259 = vrot.slane %v177, 2
  %v260 = vrot.slane %v185, 2
  %v261 = vsel %vm258, %v259, %v260
  %v262 = vrot.slane %v178, 2
  %v263 = vrot.slane %v186, 2
  %v264 = vsel %vm258, %v262, %v263
  %v265 = vrot.slane %v179, 2
  %v266 = vrot.slane %v187, 2
  %v267 = vsel %vm258, %v265, %v266
  %v268 = vrot.slane %v180, 2
  %v269 = vrot.slane %v188, 2
  %v270 = vsel %vm258, %v268, %v269
  %v271 = vrot.slane %v181, 2
  %v272 = vrot.slane %v189, 2
  %v273 = vsel %vm258, %v271, %v272
  %v274 = vrot.slane %v182, 2
  %v275 = vrot.slane %v190, 2
  %v276 = vsel %vm258, %v274, %v275
  %v277 = vrot.slane %v183, 2
  %v278 = vrot.slane %v191, 2
  %v279 = vsel %vm258, %v277, %v278
  %v280 = vrot.slane %v184, 2
  %v281 = vrot.slane %v192, 2
  %v282 = vsel %vm258, %v280, %v281
  %283 = vrot.lane.b32.xlu0 %v261, 64
  %v284 = vpop.permute.xlu0 %283
  %285 = vrot.lane.b32.xlu0 %v264, 64
  %v286 = vpop.permute.xlu0 %285
  %287 = vrot.lane.b32.xlu0 %v267, 64
  %v288 = vpop.permute.xlu0 %287
  %289 = vrot.lane.b32.xlu0 %v270, 64
  %v290 = vpop.permute.xlu0 %289
  %291 = vrot.lane.b32.xlu0 %v273, 64
  %v292 = vpop.permute.xlu0 %291
  %293 = vrot.lane.b32.xlu0 %v276, 64
  %v294 = vpop.permute.xlu0 %293
  %295 = vrot.lane.b32.xlu0 %v279, 64
  %v296 = vpop.permute.xlu0 %295
  %297 = vrot.lane.b32.xlu0 %v282, 64
  %v298 = vpop.permute.xlu0 %297
  %vm307 = vcmask 261120
  %v308 = vsel %vm307, %v177, %v235
  %v309 = vsel %vm307, %v178, %v237
  %v310 = vsel %vm307, %v179, %v239
  %v311 = vsel %vm307, %v180, %v241
  %v312 = vsel %vm307, %v181, %v243
  %v313 = vsel %vm307, %v182, %v245
  %v314 = vsel %vm307, %v183, %v247
  %v315 = vsel %vm307, %v184, %v249
  %vm316 = vcmask 523264
  %v317 = vsel %vm316, %v308, %v284
  %v318 = vsel %vm316, %v309, %v286
  %v319 = vsel %vm316, %v310, %v288
  %v320 = vsel %vm316, %v311, %v290
  %v321 = vsel %vm316, %v312, %v292
  %v322 = vsel %vm316, %v313, %v294
  %v323 = vsel %vm316, %v314, %v296
  %v324 = vsel %vm316, %v315, %v298
  %v325 = vld [vmem:[%s2] sm:$0xff]
  %v326 = vld [vmem:[%s2 + $0x8] sm:$0xff]
  %v327 = vld [vmem:[%s2 + $0x10] sm:$0xff]
  %v328 = vld [vmem:[%s2 + $0x18] sm:$0xff]
  %v329 = vld [vmem:[%s2 + $0x20] sm:$0xff]
  %v330 = vld [vmem:[%s2 + $0x28] sm:$0xff]
  %v331 = vld [vmem:[%s2 + $0x30] sm:$0xff]
  %v332 = vld [vmem:[%s2 + $0x38] sm:$0xff]
  %v333 = vld [vmem:[%s2 + $0x40] sm:$0xff]
  %v334 = vld [vmem:[%s2 + $0x48] sm:$0xff]
  %v335 = vld [vmem:[%s2 + $0x50] sm:$0xff]
  %v336 = vld [vmem:[%s2 + $0x58] sm:$0xff]
  %vm337 = vcmask 785408
  %v339 = vsel %vm337, %v317, 0
  %v342 = vsel %vm337, %v318, 0
  %v345 = vsel %vm337, %v319, 0
  %v348 = vsel %vm337, %v320, 0
  %v351 = vsel %vm337, %v321, 0
  %v354 = vsel %vm337, %v322, 0
  %v357 = vsel %vm337, %v323, 0
  %v360 = vsel %vm337, %v324, 0
  %362 = vmatpush.msra.mxu0 0.0
  %363 = vmatpush.msra.mxu0 0.0
  %364 = vmatpush.msra.mxu0 0.0
  %365 = vmatpush.msra.mxu0 0.0
  %366 = vmatpush.msra.mxu0 %v336
  %367 = vmatpush.msra.mxu0 %v335
  %368 = vmatpush.msra.mxu0 %v334
  %369 = vmatpush.msra.mxu0 %v333
  %370 = vmatpush.msra.mxu0 %v332
  %371 = vmatpush.msra.mxu0 %v331
  %372 = vmatpush.msra.mxu0 %v330
  %373 = vmatpush.msra.mxu0 %v329
  %374 = vmatpush.msra.mxu0 %v328
  %375 = vmatpush.msra.mxu0 %v327
  %376 = vmatpush.msra.mxu0 %v326
  %377 = vmatpush.msra.mxu0 %v325
  %378 = vmatmul.f32.gmra.mxu0 %v339
  %v379 = vpop.f32.mrf.mxu0
  %v380 = vadd.f32 0.0, %v379
  %381 = vmatmul.f32.gmra.mxu0 %v342
  %v382 = vpop.f32.mrf.mxu0
  %v383 = vadd.f32 0.0, %v382
  %384 = vmatmul.f32.gmra.mxu0 %v345
  %v385 = vpop.f32.mrf.mxu0
  %v386 = vadd.f32 0.0, %v385
  %387 = vmatmul.f32.gmra.mxu0 %v348
  %v388 = vpop.f32.mrf.mxu0
  %v389 = vadd.f32 0.0, %v388
  %390 = vmatmul.f32.gmra.mxu0 %v351
  %v391 = vpop.f32.mrf.mxu0
  %v392 = vadd.f32 0.0, %v391
  %393 = vmatmul.f32.gmra.mxu0 %v354
  %v394 = vpop.f32.mrf.mxu0
  %v395 = vadd.f32 0.0, %v394
  %396 = vmatmul.f32.gmra.mxu0 %v357
  %v397 = vpop.f32.mrf.mxu0
  %v398 = vadd.f32 0.0, %v397
  %399 = vmatmul.f32.gmra.mxu0 %v360
  %v400 = vpop.f32.mrf.mxu0
  %v401 = vadd.f32 0.0, %v400
  %402 = vdwg.mxu0
  %v403 = vsel %vm307, %v380, -inf
  %v404 = vrot.slane %v403, 4
  %v405 = vmax.f32 %v403, %v404
  %v406 = vrot.slane %v405, 2
  %v407 = vmax.f32 %v405, %v406
  %v408 = vrot.slane %v407, 1
  %v409 = vmax.f32 %v407, %v408
  %v410 = vsel %vm307, %v383, -inf
  %v411 = vrot.slane %v410, 4
  %v412 = vmax.f32 %v410, %v411
  %v413 = vrot.slane %v412, 2
  %v414 = vmax.f32 %v412, %v413
  %v415 = vrot.slane %v414, 1
  %v416 = vmax.f32 %v414, %v415
  %v417 = vsel %vm307, %v386, -inf
  %v418 = vrot.slane %v417, 4
  %v419 = vmax.f32 %v417, %v418
  %v420 = vrot.slane %v419, 2
  %v421 = vmax.f32 %v419, %v420
  %v422 = vrot.slane %v421, 1
  %v423 = vmax.f32 %v421, %v422
  %v424 = vsel %vm307, %v389, -inf
  %v425 = vrot.slane %v424, 4
  %v426 = vmax.f32 %v424, %v425
  %v427 = vrot.slane %v426, 2
  %v428 = vmax.f32 %v426, %v427
  %v429 = vrot.slane %v428, 1
  %v430 = vmax.f32 %v428, %v429
  %v431 = vsel %vm307, %v392, -inf
  %v432 = vrot.slane %v431, 4
  %v433 = vmax.f32 %v431, %v432
  %v434 = vrot.slane %v433, 2
  %v435 = vmax.f32 %v433, %v434
  %v436 = vrot.slane %v435, 1
  %v437 = vmax.f32 %v435, %v436
  %v438 = vsel %vm307, %v395, -inf
  %v439 = vrot.slane %v438, 4
  %v440 = vmax.f32 %v438, %v439
  %v441 = vrot.slane %v440, 2
  %v442 = vmax.f32 %v440, %v441
  %v443 = vrot.slane %v442, 1
  %v444 = vmax.f32 %v442, %v443
  %v445 = vsel %vm307, %v398, -inf
  %v446 = vrot.slane %v445, 4
  %v447 = vmax.f32 %v445, %v446
  %v448 = vrot.slane %v447, 2
  %v449 = vmax.f32 %v447, %v448
  %v450 = vrot.slane %v449, 1
  %v451 = vmax.f32 %v449, %v450
  %v452 = vsel %vm307, %v401, -inf
  %v453 = vrot.slane %v452, 4
  %v454 = vmax.f32 %v452, %v453
  %v455 = vrot.slane %v454, 2
  %v456 = vmax.f32 %v454, %v455
  %v457 = vrot.slane %v456, 1
  %v458 = vmax.f32 %v456, %v457
  %v459 = vld [vmem:[%s3] sm:$0x1]
  %v461 = vperm.slane %v459, 0
  %v463 = vadd.f32 %v409, %v461
  %v464 = vadd.f32 %v416, %v461
  %v465 = vadd.f32 %v423, %v461
  %v466 = vadd.f32 %v430, %v461
  %v467 = vadd.f32 %v437, %v461
  %v468 = vadd.f32 %v444, %v461
  %v469 = vadd.f32 %v451, %v461
  %v470 = vadd.f32 %v458, %v461
  %v471 = vmax.f32 %v463, 0.0
  %v472 = vmax.f32 %v464, 0.0
  %v473 = vmax.f32 %v465, 0.0
  %v474 = vmax.f32 %v466, 0.0
  %v475 = vmax.f32 %v467, 0.0
  %v476 = vmax.f32 %v468, 0.0
  %v477 = vmax.f32 %v469, 0.0
  %v478 = vmax.f32 %v470, 0.0
  %v487 = vrot.slane %v472, 7
  %vm488 = vcmask 1041409
  %v489 = vsel %vm488, %v487, %v471
  %v490 = vrot.slane %v473, 6
  %vm491 = vcmask 1042434
  %v492 = vsel %vm491, %v490, %v489
  %v493 = vrot.slane %v474, 5
  %vm494 = vcmask 1043459
  %v495 = vsel %vm494, %v493, %v492
  %v496 = vrot.slane %v475, 4
  %vm497 = vcmask 1044484
  %v498 = vsel %vm497, %v496, %v495
  %v499 = vrot.slane %v476, 3
  %vm500 = vcmask 1045509
  %v501 = vsel %vm500, %v499, %v498
  %v502 = vrot.slane %v477, 2
  %vm503 = vcmask 1046534
  %v504 = vsel %vm503, %v502, %v501
  %v505 = vrot.slane %v478, 1
  %vm506 = vcmask 1047559
  %v507 = vsel %vm506, %v505, %v504
  %509 = vst.msk [vmem:[%s4] sm:$0xff] %vm307, %v507
  // Predicated region
  $region18: #{cnn_encoder_forward.1} parent=0 // pred_check
    _
  $region19: #{cnn_encoder_forward.1} parent=0 // pred_check_branch
    %511 = sbr.rel (0) target = $region21
  $region20: #{cnn_encoder_forward.1} parent=0 // pred_region
    _
  $region21: #{cnn_encoder_forward.1} parent=0 // pred_fallthru
    _
  // Predicated region
  $region22: #{cnn_encoder_forward.1} parent=0 // pred_check
    _
  $region23: #{cnn_encoder_forward.1} parent=0 // pred_check_branch
    %513 = sbr.rel (0) target = $region25
  $region24: #{cnn_encoder_forward.1} parent=0 // pred_region
    _
  $region25: #{cnn_encoder_forward.1} parent=0 // pred_fallthru
    _

</llo_original>
